<compile_context>
chip_gen: v7x
topology: tpu7x:2x2x1
jax: 0.10.0
libtpu: 0.0.40
codegen_flags: <defaults>
</compile_context>

<pallas_src>
import math

import jax
import jax.numpy as jnp
from jax.experimental import pallas as pl
from jax.experimental.pallas import tpu as pltpu


def _eca_kernel_size(channel, b=1, gamma=2):
    """kernel_size = |log2(C) + b| / gamma, forced odd (as in channel_att.__init__)."""
    k = int(abs((math.log(channel, 2) + b) / gamma))
    return k if k % 2 else k + 1


# ------------------------------- Pallas kernel ------------------------------ #

def _channel_att_kernel(x_ref, t_ref, o_ref):
    """Fused global-avg-pool + channel conv1d + sigmoid + scale for a batch block.

    x_ref : (B_blk, C, HW)  channels on sublanes, H*W on lanes (native dtype)
    t_ref : (C, C)          transposed banded Toeplitz with 1/HW folded in (f32)
    o_ref : (B_blk, C, HW)
    """
    x = x_ref[...]                                              # native dtype, no upcast
    s = jnp.sum(x, axis=-1, dtype=jnp.float32)                  # (B_blk, C) f32 pooled sums
    g = jnp.dot(s, t_ref[...],                                  # (B_blk, C) conv1d over channels
                preferred_element_type=jnp.float32)
    g = jax.nn.sigmoid(g)                                       # channel gates
    o_ref[...] = (x * g.astype(x.dtype)[:, :, None]).astype(o_ref.dtype)


# ------------------------------- Pallas wrapper ------------------------------ #

def channel_att_forward(x_nchw, conv_w, *, target_block_bytes=2 << 20):
    """channel_att forward. x: (N, C, H, W) NCHW; conv_w: (1, 1, k) Conv1d weight."""
    N, C, H, W = x_nchw.shape
    HW = H * W
    k = conv_w.shape[-1]
    pad = (k - 1) // 2

    # Fold the zero-padded, bias-free Conv1d along the channel axis into a banded
    # (C, C) Toeplitz matrix:  gate[c] = sum_j w[j] * mean[c + j - pad]
    # Fold in 1/HW (so the kernel only needs sums) and pre-transpose so the in-kernel
    # matmul is pooled(B,C) @ toep_t(C,C) with no XLU transpose.
    w = conv_w.reshape(k).astype(jnp.float32)
    idx = jnp.arange(C)
    diff = idx[None, :] - idx[:, None] + pad                    # tap index m - c + pad
    toep = jnp.where((diff >= 0) & (diff < k), w[jnp.clip(diff, 0, k - 1)], 0.0)
    toep_t = (toep * (1.0 / float(HW))).T.astype(jnp.float32)   # (C, C)

    x3 = x_nchw.reshape(N, C, HW)                               # free reshape, NCHW kept
    # Lane-dense guard: pad H*W up to a multiple of 128 so stores are unmasked.
    HWp = ((HW + 127) // 128) * 128
    if HWp != HW:
        x3 = jnp.pad(x3, ((0, 0), (0, 0), (0, HWp - HW)))       # zeros don't change sums

    itemsize = jnp.dtype(x_nchw.dtype).itemsize
    per_image_bytes = C * HWp * itemsize
    # Batch images per block targeting ~target_block_bytes of activation per block.
    b_blk = max(1, min(N, target_block_bytes // max(per_image_bytes, 1)))
    if b_blk >= N and N >= 2:
        b_blk = pl.cdiv(N, 2)                                   # keep >=2 grid steps (v7x 2 TCs)
    while N % b_blk:                                            # exact divisor -> no partial blocks
        b_blk -= 1

    block_bytes = b_blk * per_image_bytes
    # in+out double-buffered ~= 4x block; leave headroom, stay under v7x's 64 MiB physical.
    vmem_limit = int(min(max(6 * block_bytes, 32 << 20), 64 << 20))

    grid = (N // b_blk,)
    out = pl.pallas_call(
        _channel_att_kernel,
        out_shape=jax.ShapeDtypeStruct((N, C, HWp), x_nchw.dtype),
        grid_spec=pltpu.PrefetchScalarGridSpec(
            num_scalar_prefetch=0,
            grid=grid,
            in_specs=[pl.BlockSpec((b_blk, C, HWp), lambda n: (n, 0, 0)),
                      pl.BlockSpec((C, C), lambda n: (0, 0))],
            out_specs=pl.BlockSpec((b_blk, C, HWp), lambda n: (n, 0, 0)),
        ),
        compiler_params=pltpu.CompilerParams(
            dimension_semantics=("parallel",),                  # batch blocks are independent
            vmem_limit_bytes=vmem_limit),
        cost_estimate=pl.CostEstimate(
            flops=int(2 * N * C * HWp + 2 * N * C * C),         # pool-sum + scale + gate matmul
            transcendentals=int(N * C),                         # sigmoid
            bytes_accessed=int(2 * N * C * HWp * itemsize + C * C * 4)),
    )(x3, toep_t)

    if HWp != HW:
        out = out[:, :, :HW]
    return out.reshape(N, C, H, W)


# ----------------------------- pure-JAX reference ---------------------------- #

def channel_att_reference(x, conv_w):
    N, C, H, W = x.shape
    k = conv_w.shape[-1]
    pad = (k - 1) // 2
    y = jnp.mean(x, axis=(2, 3))[:, None, :]                    # (N, 1, C)
    y = jax.lax.conv_general_dilated(
        y, conv_w, window_strides=(1,), padding=[(pad, pad)],
        dimension_numbers=("NCH", "OIH", "NCH"))                # (N, 1, C)
    g = jax.nn.sigmoid(y[:, 0, :])                              # (N, C)
    return x * g[:, :, None, None]


# ------------------------------------ main ----------------------------------- #

if __name__ == "__main__":
    key = jax.random.PRNGKey(0)
    kx, kw = jax.random.split(key)

    N, C, H, W = 2, 32, 16, 16                                  # channel_att(channel=32)
    k = _eca_kernel_size(C, b=1, gamma=2)                       # -> 3

    x = jax.random.normal(kx, (N, C, H, W), jnp.float32)        # PyTorch-style NCHW input
    # Conv1d(1, 1, k, bias=False) weight, PyTorch-default uniform(-1/sqrt(k), 1/sqrt(k))
    bound = 1.0 / math.sqrt(k)
    conv_w = jax.random.uniform(kw, (1, 1, k), jnp.float32, -bound, bound)

    out = channel_att_forward(x, conv_w)
    out = jax.block_until_ready(out)

    ref = channel_att_reference(x, conv_w)
    assert out.shape == (N, C, H, W)
    assert jnp.allclose(out, ref, atol=1e-4, rtol=1e-4), \
        float(jnp.max(jnp.abs(out - ref)))

    print("KERNEL_OK")
</pallas_src>

<mosaic_0001>
module attributes {stable_mosaic.version = 11 : i64} {
  func.func @_channel_att_kernel(%arg0: i32, %arg1: memref<1x32x256xf32, #tpu.memory_space<vmem>>, %arg2: memref<32x32xf32, #tpu.memory_space<vmem>>, %arg3: memref<1x32x256xf32, #tpu.memory_space<vmem>>) attributes {dimension_semantics = [#tpu.dimension_semantics<parallel>], iteration_bounds = array<i64: 2>, scalar_prefetch = 0 : i64, scratch_operands = 0 : i64, tpu.core_type = #tpu.core_type<tc>, window_params = [{transform_indices = @transform_0, window_bounds = array<i64: 1, 32, 256>}, {pipeline_mode = #tpu.pipeline_mode<synchronous>, transform_indices = @transform_1, window_bounds = array<i64: 32, 32>}, {transform_indices = @transform_2, window_bounds = array<i64: 1, 32, 256>}]} {
    %c0 = arith.constant 0 : index
    %c0_0 = arith.constant 0 : index
    %c0_1 = arith.constant 0 : index
    %0 = vector.load %arg1[%c0, %c0_0, %c0_1] : memref<1x32x256xf32, #tpu.memory_space<vmem>>, vector<1x32x256xf32>
    %cst = arith.constant dense<0.000000e+00> : vector<1x32xf32>
    %1 = vector.multi_reduction <add>, %0, %cst [2] : vector<1x32x256xf32> to vector<1x32xf32>
    %c0_2 = arith.constant 0 : index
    %c0_3 = arith.constant 0 : index
    %2 = vector.load %arg2[%c0_2, %c0_3] : memref<32x32xf32, #tpu.memory_space<vmem>>, vector<32x32xf32>
    %cst_4 = arith.constant dense<0.000000e+00> : vector<1x32xf32>
    %3 = tpu.matmul %1, %2, %cst_4 {dimension_numbers = #tpu.dot_dimension_numbers<[1], [0], [0], [1], [0, 0, 1, 1], [], []>} : vector<1x32xf32>, vector<32x32xf32>, vector<1x32xf32> -> vector<1x32xf32>
    %4 = arith.negf %3 : vector<1x32xf32>
    %5 = math.exp %4 : vector<1x32xf32>
    %cst_5 = arith.constant 1.000000e+00 : f32
    %6 = vector.broadcast %cst_5 : f32 to vector<1x32xf32>
    %7 = arith.addf %6, %5 : vector<1x32xf32>
    %8 = arith.divf %6, %7 : vector<1x32xf32>
    %9 = vector.shape_cast %8 : vector<1x32xf32> to vector<1x32x1xf32>
    %10 = vector.broadcast %9 : vector<1x32x1xf32> to vector<1x32x256xf32>
    %11 = arith.mulf %0, %10 : vector<1x32x256xf32>
    %c0_6 = arith.constant 0 : index
    %c0_7 = arith.constant 0 : index
    %c0_8 = arith.constant 0 : index
    %12 = vector.load %arg3[%c0_6, %c0_7, %c0_8] : memref<1x32x256xf32, #tpu.memory_space<vmem>>, vector<1x32x256xf32>
    tpu.vector_store %arg3[%c0_6, %c0_7, %c0_8], %11 {strides = array<i32>} : memref<1x32x256xf32, #tpu.memory_space<vmem>>, vector<1x32x256xf32>,
    return
  }
  func.func @transform_0(%arg0: i32) -> (i32, i32, i32) {
    %c0_i32 = arith.constant 0 : i32
    %c0_i32_0 = arith.constant 0 : i32
    %c0_i32_1 = arith.constant 0 : i32
    return %arg0, %c0_i32, %c0_i32_0 : i32, i32, i32
  }
  func.func @transform_1(%arg0: i32) -> (i32, i32) {
    %c0_i32 = arith.constant 0 : i32
    %c0_i32_0 = arith.constant 0 : i32
    %c0_i32_1 = arith.constant 0 : i32
    return %c0_i32, %c0_i32_0 : i32, i32
  }
  func.func @transform_2(%arg0: i32) -> (i32, i32, i32) {
    %c0_i32 = arith.constant 0 : i32
    %c0_i32_0 = arith.constant 0 : i32
    %c0_i32_1 = arith.constant 0 : i32
    return %arg0, %c0_i32, %c0_i32_0 : i32, i32, i32
  }
}

</mosaic_0001>

<llo_original>
// kernel: tpu_custom_call.1
$region0: #{tpu_custom_call.1}
  #allocation0 [shape = 'u32[]', space=smem, size = 0x4, offset = 0x4, fixed_abs, tag = 'smem constant byte address 0x4 - core index']
  #allocation1 [shape = 'u32[144,128]{1,0:T(1,128)}', space=vmem, size = 0x12000, scoped, tag = 'internal scratch']
  %s0 = inlined_call_operand.hbm [shape: f32[2,32,256], index: 0, kind: input, shape index: {}]
  %s1 = inlined_call_operand.hbm [shape: f32[32,32], index: 1, kind: input, shape index: {}]
  %s2 = inlined_call_operand.hbm [shape: f32[2,32,256], index: 2, kind: output, shape index: {}]
  %s3 = sld [smem:[#allocation0]]
  $region49: #{tpu_custom_call.1} parent=0
    _
  %s5 = ssub.s32 1, %s3
  %s6 = scalar_select 0, %s5, %s3
  $region1: #{tpu_custom_call.1} parent=0
    #allocation2 [shape = 'u8[65536]{0}', space=vmem, size = 0x10000, scoped, tag = 'input window, operand 0']
    #allocation3 [shape = 's32[2]{0}', space=sflag, size = 0x8, scoped, tag = 'scoped memory for tpu_custom_call.1']
    #allocation4 [shape = 's32[2]{0}', space=sflag, size = 0x8, scoped, tag = 'scoped memory for tpu_custom_call.1']
    #allocation5 [shape = 'u8[16384]{0}', space=vmem, size = 0x4000, scoped, tag = 'input window, operand 1, single buffered']
    #allocation6 [shape = 's32[1]{0}', space=sflag, size = 0x4, scoped, tag = 'scoped memory for tpu_custom_call.1']
    #allocation7 [shape = 'u8[65536]{0}', space=vmem, size = 0x10000, scoped, tag = 'output window, operand 0']
    %7 = vsyncpa [#allocation3], 0
    %s8 = scalar_lea.sflag [#allocation3], 1
    %9 = vsyncpa %s8, 0
    %10 = vsyncpa [#allocation6], 0
    %11 = vsyncpa [#allocation4], 0
    %s12 = scalar_lea.sflag [#allocation4], 1
    %13 = vsyncpa %s12, 0
    loop: start=0, step=1, limit=4
    $region2: #{tpu_custom_call.1} parent=1 // loop_pre_header
      _
    $region3: #{tpu_custom_call.1} parent=1 // loop_header
      %s15 = sphi 0, %s19
      %p16 = scmp.ge.s32.totalorder %s15, 4
      %s25 = sphi 0, %s27
      %s28 = sphi 0, %s25
      %s29 = sphi 0, %s28
      %s45 = sphi 0, %s29
      %s49 = sphi 0, %s49
      %s51 = sphi 0, %s49
      %s52 = sphi 0, %s51
      %s66 = sphi 0, %s52
      %s72 = sphi 0, %s74
      %s75 = sphi 0, %s72
      %s76 = sphi 0, %s75
      %s92 = sphi 0, %s76
    $region4: #{tpu_custom_call.1} parent=1 // loop_header_branch
      %18 = sbr.rel (%p16) target = $region8
    $region5: #{tpu_custom_call.1} parent=1 // loop_body
      %s20 = ssub.s32 %s15, 1
      %s21 = ssub.s32 %s15, 2
      %s22 = sadd.s32 %s15, 1
      %s23 = ssub.s32 %s15, %s22
      %p24 = scmp.eq.s32.totalorder %s23, 0
      %s26 = sadd.s32 %s25, 1
      %s27 = scalar_select %p24, %s25, %s26
      %p30 = pneg %p24
      %p31 = scmp.eq.s32.totalorder %s15, 1
      %p32 = por %p30, %p31
      %p33 = scmp.ne.s32.totalorder %s25, %s28
      %p34 = scmp.eq.s32.totalorder %s15, 0
      %p35 = por %p33, %p34
      %p36 = scmp.ne.s32.totalorder %s25, %s28
      %p37 = scmp.eq.s32.totalorder %s20, 1
      %p38 = por %p36, %p37
      %p39 = scmp.ne.s32.totalorder %s28, %s29
      %p40 = scmp.eq.s32.totalorder %s20, 0
      %p41 = por %p39, %p40
      %p42 = scmp.ne.s32.totalorder %s28, %s29
      %p43 = scmp.eq.s32.totalorder %s21, 1
      %p44 = por %p42, %p43
      %p46 = scmp.ne.s32.totalorder %s29, %s45
      %p47 = scmp.eq.s32.totalorder %s21, 0
      %p48 = por %p46, %p47
      %s50 = sadd.s32 %s49, 1
      %p53 = scmp.eq.s32.totalorder %s15, 1
      %p54 = scmp.ne.s32.totalorder %s49, %s51
      %p55 = scmp.eq.s32.totalorder %s15, 0
      %p56 = por %p54, %p55
      %p57 = scmp.ne.s32.totalorder %s49, %s51
      %p58 = scmp.eq.s32.totalorder %s20, 1
      %p59 = por %p57, %p58
      %p60 = scmp.ne.s32.totalorder %s51, %s52
      %p61 = scmp.eq.s32.totalorder %s20, 0
      %p62 = por %p60, %p61
      %p63 = scmp.ne.s32.totalorder %s51, %s52
      %p64 = scmp.eq.s32.totalorder %s21, 1
      %p65 = por %p63, %p64
      %p67 = scmp.ne.s32.totalorder %s52, %s66
      %p68 = scmp.eq.s32.totalorder %s21, 0
      %p69 = por %p67, %p68
      %s70 = ssub.s32 %s15, %s22
      %p71 = scmp.eq.s32.totalorder %s70, 0
      %s73 = sadd.s32 %s72, 1
      %s74 = scalar_select %p71, %s72, %s73
      %p77 = pneg %p71
      %p78 = scmp.eq.s32.totalorder %s15, 1
      %p79 = por %p77, %p78
      %p80 = scmp.ne.s32.totalorder %s72, %s75
      %p81 = scmp.eq.s32.totalorder %s15, 0
      %p82 = por %p80, %p81
      %p83 = scmp.ne.s32.totalorder %s72, %s75
      %p84 = scmp.eq.s32.totalorder %s20, 1
      %p85 = por %p83, %p84
      %p86 = scmp.ne.s32.totalorder %s75, %s76
      %p87 = scmp.eq.s32.totalorder %s20, 0
      %p88 = por %p86, %p87
      %p89 = scmp.ne.s32.totalorder %s75, %s76
      %p90 = scmp.eq.s32.totalorder %s21, 1
      %p91 = por %p89, %p90
      %p93 = scmp.ne.s32.totalorder %s76, %s92
      %p94 = scmp.eq.s32.totalorder %s21, 0
      %p95 = por %p93, %p94
      %p96 = scmp.le.s32.totalorder 1, %s15
      %p97 = scmp.lt.s32.totalorder %s15, 3
      %p98 = pnand %p96, %p97
      %p99 = pneg %p98
      // Predicated region
      $region9: #{tpu_custom_call.1} parent=5 // pred_check
        _
      $region10: #{tpu_custom_call.1} parent=5 // pred_check_branch
        %101 = sbr.rel (%p98) target = $region12
      $region11: #{tpu_custom_call.1} parent=5 // pred_region
        %s102 = ssub.s32 %s15, 1
        // Predicated region
        $region13: #{tpu_custom_call.1} parent=11 // pred_check
          %p103 = pneg %p62
        $region14: #{tpu_custom_call.1} parent=11 // pred_check_branch
          %105 = sbr.rel (%p103) target = $region16
        $region15: #{tpu_custom_call.1} parent=11 // pred_region
          %s107 = ssub.s32 512, 512
          %108 = vsyncadd [#allocation6], %s107
          %s109 = sshll.u32 [#allocation5], 4
          %s110 = int_to_ptr.vmem [resolvable:$true] %s109
          %115 = dma.hbm_to_vmem [thread:$0]  %s1, 512, %s110, [#allocation6], 128, 128, 8
        $region16: #{tpu_custom_call.1} parent=11 // pred_fallthru
          _
      $region12: #{tpu_custom_call.1} parent=5 // pred_fallthru
        _
      %p116 = scmp.lt.s32.totalorder %s15, 2
      // Predicated region
      $region17: #{tpu_custom_call.1} parent=5 // pred_check
        %p117 = pneg %p116
      $region18: #{tpu_custom_call.1} parent=5 // pred_check_branch
        %119 = sbr.rel (%p117) target = $region20
      $region19: #{tpu_custom_call.1} parent=5 // pred_region
        // Predicated region
        $region21: #{tpu_custom_call.1} parent=19 // pred_check
          %p120 = pneg %p35
        $region22: #{tpu_custom_call.1} parent=19 // pred_check_branch
          %122 = sbr.rel (%p120) target = $region24
        $region23: #{tpu_custom_call.1} parent=19 // pred_region
          %s123 = sand.u32 %s25, 1
          %s124 = scalar_lea.sflag [#allocation3], %s123
          %s125 = sand.u32 %s25, 1
          %s126 = smul.addr %s125, 64
          %s127 = scalar_lea.vmem [#allocation2], %s126
          %s129 = ssub.s32 1024, 1024
          %130 = vsyncadd %s124, %s129
          %s131 = smul.addr %s15, 8
          %s132 = smul.addr %s131, 128
          %s133 = scalar_lea.hbm %s0, %s132
          %s134 = sshll.u32 %s127, 4
          %s135 = int_to_ptr.vmem [resolvable:$true] %s134
          %140 = dma.hbm_to_vmem [thread:$0]  %s133, 1024, %s135, %s124, 256, 256, 16
        $region24: #{tpu_custom_call.1} parent=19 // pred_fallthru
          _
      $region20: #{tpu_custom_call.1} parent=5 // pred_fallthru
        _
      %p141 = scmp.le.s32.totalorder 1, %s15
      %p142 = scmp.lt.s32.totalorder %s15, 3
      %p143 = pnand %p141, %p142
      %p144 = pneg %p143
      // Predicated region
      $region25: #{tpu_custom_call.1} parent=5 // pred_check
        _
      $region26: #{tpu_custom_call.1} parent=5 // pred_check_branch
        %146 = sbr.rel (%p143) target = $region28
      $region27: #{tpu_custom_call.1} parent=5 // pred_region
        %s147 = ssub.s32 %s15, 1
        %s148 = sand.u32 %s28, 1
        %s149 = scalar_lea.sflag [#allocation3], %s148
        %s150 = sand.u32 %s28, 1
        %s151 = smul.addr %s150, 64
        %s152 = scalar_lea.vmem [#allocation2], %s151
        // Predicated region
        $region29: #{tpu_custom_call.1} parent=27 // pred_check
          %p153 = pneg %p41
        $region30: #{tpu_custom_call.1} parent=27 // pred_check_branch
          %155 = sbr.rel (%p153) target = $region32
        $region31: #{tpu_custom_call.1} parent=27 // pred_region
          %156 = dma.done %s149, 1024
        $region32: #{tpu_custom_call.1} parent=27 // pred_fallthru
          _
        // Predicated region
        $region33: #{tpu_custom_call.1} parent=27 // pred_check
          %p157 = pneg %p62
        $region34: #{tpu_custom_call.1} parent=27 // pred_check_branch
          %159 = sbr.rel (%p157) target = $region36
        $region35: #{tpu_custom_call.1} parent=27 // pred_region
          %160 = dma.done [#allocation6], 512
        $region36: #{tpu_custom_call.1} parent=27 // pred_fallthru
          _
        %s161 = sand.u32 %s28, 1
        %s162 = scalar_lea.sflag [#allocation3], %s161
        %s163 = sand.u32 %s28, 1
        %s164 = smul.addr %s163, 64
        %s165 = scalar_lea.vmem [#allocation2], %s164
        %p166 = pneg %p41
        %p167 = pneg %p38
        %p168 = pneg %p62
        %p169 = pneg %p59
        %p170 = pneg %p88
        %p171 = pneg %p85
        %s172 = sand.u32 %s75, 1
        %s173 = scalar_lea.sflag [#allocation4], %s172
        %s174 = sand.u32 %s75, 1
        %s175 = smul.addr %s174, 64
        %s176 = scalar_lea.vmem [#allocation7], %s175
        %v177 = vld [vmem:[%s152] sm:$0xff]
        %v178 = vld [vmem:[%s152 + $0x8] sm:$0xff]
        %v179 = vld [vmem:[%s152 + $0x10] sm:$0xff]
        %v180 = vld [vmem:[%s152 + $0x18] sm:$0xff]
        %v181 = vld [vmem:[%s152 + $0x20] sm:$0xff]
        %v182 = vld [vmem:[%s152 + $0x28] sm:$0xff]
        %v183 = vld [vmem:[%s152 + $0x30] sm:$0xff]
        %v184 = vld [vmem:[%s152 + $0x38] sm:$0xff]
        %v185 = vadd.f32 %v177, %v178
        %186 = vadd.xlane.f32.xlu0 %v185
        %v187 = vpop.xlane.xlu0 %186
        %v188 = vadd.f32 %v179, %v180
        %189 = vadd.xlane.f32.xlu0 %v188
        %v190 = vpop.xlane.xlu0 %189
        %v191 = vadd.f32 %v181, %v182
        %192 = vadd.xlane.f32.xlu0 %v191
        %v193 = vpop.xlane.xlu0 %192
        %v194 = vadd.f32 %v183, %v184
        %195 = vadd.xlane.f32.xlu0 %v194
        %v196 = vpop.xlane.xlu0 %195
        %v197 = vld [vmem:[#allocation5] sm:$0xff]
        %v198 = vld [vmem:[#allocation5 + $0x8] sm:$0xff]
        %v199 = vld [vmem:[#allocation5 + $0x10] sm:$0xff]
        %v200 = vld [vmem:[#allocation5 + $0x18] sm:$0xff]
        %v205 = vlaneseq
        %v206 = vand.u32 %v205, 127
        %v207 = vlaneseq
        %v208 = vshrl.u32 %v207, 7
        %v209 = vsub.s32 %v206, %v208
        %v210 = vrot.slane %v187, %v209
        %v211 = vadd.s32 %v206, 4294967288
        %v212 = vlaneseq
        %v213 = vshrl.u32 %v212, 7
        %v214 = vsub.s32 %v211, %v213
        %v215 = vrot.slane %v190, %v214
        %vm216 = vcmask 130112
        %v217 = vsel %vm216, %v215, %v210
        %v218 = vadd.s32 %v206, 4294967280
        %v219 = vlaneseq
        %v220 = vshrl.u32 %v219, 7
        %v221 = vsub.s32 %v218, %v220
        %v222 = vrot.slane %v193, %v221
        %vm223 = vcmask 195712
        %v224 = vsel %vm223, %v222, %v217
        %v225 = vadd.s32 %v206, 4294967272
        %v226 = vlaneseq
        %v227 = vshrl.u32 %v226, 7
        %v228 = vsub.s32 %v225, %v227
        %v229 = vrot.slane %v196, %v228
        %vm230 = vcmask 261312
        %v231 = vsel %vm230, %v229, %v224
        %vm232 = vcmask 261120
        %v233 = vsel %vm232, %v231, 0
        %235 = vmatprep.subr.mxu0 0.0
        %236 = vmatpush1.msra.mxu0 %v197
        %237 = vmatprep.subr.mxu0 0.0
        %238 = vmatpush1.msra.mxu0 %v198
        %239 = vmatprep.subr.mxu0 0.0
        %240 = vmatpush1.msra.mxu0 %v199
        %241 = vmatprep.subr.mxu0 0.0
        %242 = vmatpush1.msra.mxu0 %v200
        %243 = vmatprep.subr.mxu0 0.0
        %244 = vmatpush1.msra.mxu0 0.0
        %245 = vmatprep.subr.mxu0 0.0
        %246 = vmatpush1.msra.mxu0 0.0
        %247 = vmatprep.subr.mxu0 0.0
        %248 = vmatpush1.msra.mxu0 0.0
        %249 = vmatprep.subr.mxu0 0.0
        %250 = vmatpush1.msra.mxu0 0.0
        %251 = vmatprep.subr.mxu0 0.0
        %252 = vmatpush1.msra.mxu0 0.0
        %253 = vmatprep.subr.mxu0 0.0
        %254 = vmatpush1.msra.mxu0 0.0
        %255 = vmatprep.subr.mxu0 0.0
        %256 = vmatpush1.msra.mxu0 0.0
        %257 = vmatprep.subr.mxu0 0.0
        %258 = vmatpush1.msra.mxu0 0.0
        %259 = vmatprep.subr.mxu0 0.0
        %260 = vmatpush1.msra.mxu0 0.0
        %261 = vmatprep.subr.mxu0 0.0
        %262 = vmatpush1.msra.mxu0 0.0
        %263 = vmatprep.subr.mxu0 0.0
        %264 = vmatpush1.msra.mxu0 0.0
        %265 = vmatprep.subr.mxu0 0.0
        %266 = vmatpush1.msra.mxu0 0.0
        %267 = vmatprep.subr.mxu0 0.0
        %268 = vmatpush1.msra.mxu0 0.0
        %269 = vmatprep.subr.mxu0 0.0
        %270 = vmatpush1.msra.mxu0 0.0
        %271 = vmatprep.subr.mxu0 0.0
        %272 = vmatpush1.msra.mxu0 0.0
        %273 = vmatprep.subr.mxu0 0.0
        %274 = vmatpush1.msra.mxu0 0.0
        %275 = vmatprep.subr.mxu0 0.0
        %276 = vmatpush1.msra.mxu0 0.0
        %277 = vmatprep.subr.mxu0 0.0
        %278 = vmatpush1.msra.mxu0 0.0
        %279 = vmatprep.subr.mxu0 0.0
        %280 = vmatpush1.msra.mxu0 0.0
        %281 = vmatprep.subr.mxu0 0.0
        %282 = vmatpush1.msra.mxu0 0.0
        %283 = vmatprep.subr.mxu0 0.0
        %284 = vmatpush1.msra.mxu0 0.0
        %285 = vmatprep.subr.mxu0 0.0
        %286 = vmatpush1.msra.mxu0 0.0
        %287 = vmatprep.subr.mxu0 0.0
        %288 = vmatpush1.msra.mxu0 0.0
        %289 = vmatprep.subr.mxu0 0.0
        %290 = vmatpush1.msra.mxu0 0.0
        %291 = vmatprep.subr.mxu0 0.0
        %292 = vmatpush1.msra.mxu0 0.0
        %293 = vmatprep.subr.mxu0 0.0
        %294 = vmatpush1.msra.mxu0 0.0
        %295 = vmatprep.subr.mxu0 0.0
        %296 = vmatpush1.msra.mxu0 0.0
        %297 = vmatprep.subr.mxu0 0.0
        %298 = vmatpush1.msra.mxu0 0.0
        %299 = vmatprep.mubr.f32.mxu0 0.0
        %300 = vmatmul.mubr.f32.gmra.mrb[0].mxu0 %v233
        %v301 = vpop.f32.mrb[0].mxu0
        %v302 = vadd.f32 0.0, %v301
        %v303 = vpop.f32.mrb[0].mxu0
        %304 = vdwg.mxu0
        %v305 = vxor.u32 %v302, 2147483648
        %v306 = vmul.f32 %v305, 1.442695
        %v307 = vpow.pop %v306
        %v308 = vadd.f32 %v307, 1.0
        %v309 = vrcp.pop %v308
        %v310 = vmul.f32 1.0, %v309
        %v311 = vlaneseq
        %v312 = vshrl.u32 %v311, 7
        %v313 = vsub.s32 0, %v312
        %v314 = vrot.slane %v310, %v313
        %316 = vbcast.lane.b32.xlu0 %v314, 256
        %v317 = vpop.permute.xlu0 %316
        %s319 = sor.u32 256, 8
        %320 = vbcast.lane.b32.xlu0 %v314, %s319
        %v321 = vpop.permute.xlu0 %320
        %s323 = sor.u32 256, 16
        %324 = vbcast.lane.b32.xlu0 %v314, %s323
        %v325 = vpop.permute.xlu0 %324
        %s327 = sor.u32 256, 24
        %328 = vbcast.lane.b32.xlu0 %v314, %s327
        %v329 = vpop.permute.xlu0 %328
        %v330 = vmul.f32 %v177, %v317
        %v331 = vmul.f32 %v178, %v317
        %v332 = vmul.f32 %v179, %v321
        %v333 = vmul.f32 %v180, %v321
        %v334 = vmul.f32 %v181, %v325
        %v335 = vmul.f32 %v182, %v325
        %v336 = vmul.f32 %v183, %v329
        %v337 = vmul.f32 %v184, %v329
        %338 = vst [vmem:[%s176] sm:$0xff] %v330
        %339 = vst [vmem:[%s176 + $0x8] sm:$0xff] %v331
        %340 = vst [vmem:[%s176 + $0x10] sm:$0xff] %v332
        %341 = vst [vmem:[%s176 + $0x18] sm:$0xff] %v333
        %342 = vst [vmem:[%s176 + $0x20] sm:$0xff] %v334
        %343 = vst [vmem:[%s176 + $0x28] sm:$0xff] %v335
        %344 = vst [vmem:[%s176 + $0x30] sm:$0xff] %v336
        %345 = vst [vmem:[%s176 + $0x38] sm:$0xff] %v337
        %s346 = sand.u32 %s75, 1
        %s347 = scalar_lea.sflag [#allocation4], %s346
        %s348 = sand.u32 %s75, 1
        %s349 = smul.addr %s348, 64
        %s350 = scalar_lea.vmem [#allocation7], %s349
        // Predicated region
        $region37: #{tpu_custom_call.1} parent=27 // pred_check
          %p351 = pneg %p85
        $region38: #{tpu_custom_call.1} parent=27 // pred_check_branch
          %353 = sbr.rel (%p351) target = $region40
        $region39: #{tpu_custom_call.1} parent=27 // pred_region
          %s355 = ssub.s32 1024, 1024
          %356 = vsyncadd %s347, %s355
          %s357 = smul.addr %s20, 8
          %s358 = smul.addr %s357, 128
          %s359 = scalar_lea.hbm %s2, %s358
          %s360 = sshll.u32 %s350, 4
          %s361 = int_to_ptr.vmem [resolvable:$true] %s360
          %366 = dma.vmem_to_hbm [thread:$0]  %s361, 1024, %s359, %s347, 256, 256, 16
        $region40: #{tpu_custom_call.1} parent=27 // pred_fallthru
          _
      $region28: #{tpu_custom_call.1} parent=5 // pred_fallthru
        _
      %p367 = scmp.le.s32.totalorder 2, %s15
      // Predicated region
      $region41: #{tpu_custom_call.1} parent=5 // pred_check
        %p368 = pneg %p367
      $region42: #{tpu_custom_call.1} parent=5 // pred_check_branch
        %370 = sbr.rel (%p368) target = $region44
      $region43: #{tpu_custom_call.1} parent=5 // pred_region
        %s371 = ssub.s32 %s15, 2
        // Predicated region
        $region45: #{tpu_custom_call.1} parent=43 // pred_check
          %p372 = pneg %p91
        $region46: #{tpu_custom_call.1} parent=43 // pred_check_branch
          %374 = sbr.rel (%p372) target = $region48
        $region47: #{tpu_custom_call.1} parent=43 // pred_region
          %s375 = sand.u32 %s76, 1
          %s376 = scalar_lea.sflag [#allocation4], %s375
          %s377 = sand.u32 %s76, 1
          %s378 = smul.addr %s377, 64
          %s379 = scalar_lea.vmem [#allocation7], %s378
          %380 = dma.done %s376, 1024
        $region48: #{tpu_custom_call.1} parent=43 // pred_fallthru
          _
      $region44: #{tpu_custom_call.1} parent=5 // pred_fallthru
        _
    $region6: #{tpu_custom_call.1} parent=1 // loop_footer
      %s19 = sadd.s32 1, %s15
    $region7: #{tpu_custom_call.1} parent=1 // loop_footer_branch
      %14 = sbr.rel target = $region3
    $region8: #{tpu_custom_call.1} parent=1 // loop_exit
      _
    %381 = vsyncpa [#allocation3], 1
    %s382 = scalar_lea.sflag [#allocation3], 1
    %383 = vsyncpa %s382, 1
    %384 = vsyncpa [#allocation6], 1
    %385 = vsyncpa [#allocation4], 1
    %s386 = scalar_lea.sflag [#allocation4], 1
    %387 = vsyncpa %s386, 1

</llo_original>
